<compile_context>
chip_gen: v7x
topology: tpu7x:2x2x1
jax: 0.10.0
libtpu: 0.0.40
codegen_flags: <defaults>
</compile_context>

<pallas_src>
import functools

import jax
import jax.numpy as jnp
import numpy as np
from jax import lax
from jax.experimental import pallas as pl
from jax.experimental.pallas import tpu as pltpu


# ---------------------------------------------------------------------------
# pltpu.roll rotation-convention probe (run once): sign=+1 means
# pltpu.roll(x, s, ax) == jnp.roll(x, s, ax). Guards the stencil shifts against
# a sign flip in the hardware rotate lowering.
# ---------------------------------------------------------------------------
_ROLL_SIGNS = None


def _roll_sign_probe_kernel(x_ref, r0_ref, r1_ref):
    r0_ref[...] = pltpu.roll(x_ref[...], shift=1, axis=0)
    r1_ref[...] = pltpu.roll(x_ref[...], shift=1, axis=1)


def _roll_signs():
    global _ROLL_SIGNS
    if _ROLL_SIGNS is None:
        x = jnp.arange(16 * 256, dtype=jnp.float32).reshape(16, 256)
        r0, r1 = pl.pallas_call(
            _roll_sign_probe_kernel,
            out_shape=(jax.ShapeDtypeStruct(x.shape, x.dtype),
                       jax.ShapeDtypeStruct(x.shape, x.dtype)),
        )(x)
        signs = []
        for r, ax in ((r0, 0), (r1, 1)):
            if bool(jnp.array_equal(r, jnp.roll(x, 1, axis=ax))):
                signs.append(1)
            elif bool(jnp.array_equal(r, jnp.roll(x, -1, axis=ax))):
                signs.append(-1)
            else:
                raise NotImplementedError("unexpected pltpu.roll semantics")
        _ROLL_SIGNS = tuple(signs)
    return _ROLL_SIGNS


def _dwconv_bn_relu_kernel(x_ref, w_ref, b_ref, o_ref, *, mult, c_blk,
                           roll_signs):
    """One (channel-block, batch) tile per grid step.

    x_ref: (1, c_blk, H, W)       input planes (W -> lanes, H -> sublanes)
    w_ref: (Cout*9,)  SMEM        BN-scale-folded taps, output-channel major
    b_ref: (Cout,)    SMEM        folded BN bias
    o_ref: (1, c_blk*mult, H, W)  output channels fed by this input block
    """
    H = x_ref.shape[2]
    W = x_ref.shape[3]
    sign_h, sign_w = roll_signs

    row = lax.broadcasted_iota(jnp.int32, (H, W), 0)
    col = lax.broadcasted_iota(jnp.int32, (H, W), 1)
    # Hoisted border masks: computed once, reused by every tap / channel.
    row_lo = row >= 1          # valid when reading row i-1
    row_hi = row <= H - 2      # valid when reading row i+1
    col_lo = col >= 1          # valid when reading col j-1
    col_hi = col <= W - 2      # valid when reading col j+1

    c_grid = pl.program_id(0)

    for ci in range(c_blk):
        x = x_ref[0, ci].astype(jnp.float32)                   # (H, W)

        # Three row-shifted variants, computed once per input plane.  The
        # 1-pixel zero halo is handled in-register with XLU rolls + masks, so
        # the activation is read from HBM exactly once and never padded.
        rows = []
        for dy in range(3):
            d = dy - 1
            if d == 0:
                rows.append(x)
            else:
                r = pltpu.roll(x, shift=(sign_h * (-d)) % H, axis=0)
                rows.append(jnp.where(row_hi if d > 0 else row_lo, r, 0.0))

        c_abs = c_grid * c_blk + ci                            # input channel
        for m in range(mult):                                  # m outermost:
            o_idx = c_abs * mult + m                           # few live temps
            wb = o_idx * 9
            # Accumulator starts at the folded BN bias (scale is in the taps).
            acc = jnp.full((H, W), b_ref[o_idx], jnp.float32)
            for dy in range(3):
                r = rows[dy]
                for dx in range(3):
                    d = dx - 1
                    if d == 0:
                        s = r
                    else:
                        s = pltpu.roll(r, shift=(sign_w * (-d)) % W, axis=1)
                        s = jnp.where(col_hi if d > 0 else col_lo, s, 0.0)
                    # scalar tap from SMEM x vector plane (VPU)
                    acc = acc + s * w_ref[wb + dy * 3 + dx]
            o_ref[0, ci * mult + m] = jnp.maximum(acc, 0.0).astype(o_ref.dtype)


@functools.partial(jax.jit, static_argnames=("roll_signs",))
def _dwconv_bn_relu_impl(x_nchw, weight_oihw, bn_gamma, bn_beta, bn_mean,
                         bn_var, eps, *, roll_signs):
    N, Cin, H, W = x_nchw.shape
    Cout = weight_oihw.shape[0]
    assert Cout % Cin == 0, "groups=dw_channels requires Cout % Cin == 0"
    mult = Cout // Cin

    # ---- fold eval-mode BatchNorm into the conv taps / bias (tiny tensors) ----
    scale = (bn_gamma.astype(jnp.float32) /
             jnp.sqrt(bn_var.astype(jnp.float32) + eps))                 # (Cout,)
    bias = bn_beta.astype(jnp.float32) - bn_mean.astype(jnp.float32) * scale
    w = weight_oihw[:, 0, :, :].astype(jnp.float32) * scale[:, None, None]
    w_flat = w.reshape(-1)        # (Cout*9,), index = o*9 + ky*3 + kx
    b_flat = bias                 # (Cout,)

    # ---- channel blocking: amortize per-grid-step overhead on small planes ----
    itemsize = jnp.dtype(x_nchw.dtype).itemsize
    per_chan_bytes = (1 + mult) * H * W * itemsize
    budget = 8 * 1024 * 1024
    c_blk = int(max(1, min(Cin, budget // max(per_chan_bytes, 1))))
    while Cin % c_blk != 0:
        c_blk -= 1
    # keep >= 2 grid steps so v7x's two TensorCores both get work
    if N * (Cin // c_blk) < 2 and c_blk > 1:
        c_blk = max(d for d in range(1, c_blk) if Cin % d == 0)
    c_grid = Cin // c_blk

    # ---- explicit VMEM budget (v5e default scoped limit is only 16 MiB) ----
    block_io_bytes = 2 * c_blk * (1 + mult) * H * W * itemsize   # double-buffered
    temp_bytes = 10 * H * W * 4                                  # in-kernel f32 temps
    vmem_limit = int(min(64 * 2 ** 20,
                         max(32 * 2 ** 20, 2 * (block_io_bytes + temp_bytes))))

    kernel = functools.partial(_dwconv_bn_relu_kernel, mult=mult, c_blk=c_blk,
                               roll_signs=roll_signs)

    return pl.pallas_call(
        kernel,
        out_shape=jax.ShapeDtypeStruct((N, Cout, H, W), x_nchw.dtype),
        grid=(c_grid, N),
        in_specs=[
            pl.BlockSpec((1, c_blk, H, W), lambda c, n: (n, c, 0, 0)),
            # Tiny folded taps / bias live in SMEM for the whole grid: no
            # per-step DMA and scalar reads in the kernel.
            pl.BlockSpec(memory_space=pltpu.MemorySpace.SMEM),
            pl.BlockSpec(memory_space=pltpu.MemorySpace.SMEM),
        ],
        out_specs=pl.BlockSpec((1, c_blk * mult, H, W),
                               lambda c, n: (n, c, 0, 0)),
        compiler_params=pltpu.CompilerParams(
            dimension_semantics=("parallel", "parallel"),
            vmem_limit_bytes=vmem_limit),
    )(x_nchw, w_flat, b_flat)


def dwconv_bn_relu(x_nchw, weight_oihw, bn_gamma, bn_beta, bn_mean, bn_var,
                   *, stride=1, eps=1e-5):
    """Forward pass of _DWConv (depthwise conv + BN(eval) + ReLU), NCHW in/out."""
    # TODO(synk): stride > 1 not implemented in the kernel (module default is 1).
    assert stride == 1, "only stride=1 is implemented"
    return _dwconv_bn_relu_impl(x_nchw, weight_oihw, bn_gamma, bn_beta, bn_mean,
                                bn_var, eps, roll_signs=_roll_signs())


def _reference(x_nchw, weight_oihw, bn_gamma, bn_beta, bn_mean, bn_var, eps=1e-5):
    Cin = x_nchw.shape[1]
    y = jax.lax.conv_general_dilated(
        x_nchw.astype(jnp.float32), weight_oihw.astype(jnp.float32),
        window_strides=(1, 1), padding=((1, 1), (1, 1)),
        dimension_numbers=("NCHW", "OIHW", "NCHW"),
        feature_group_count=Cin)
    scale = (bn_gamma / jnp.sqrt(bn_var + eps)).reshape(1, -1, 1, 1)
    bias = (bn_beta - bn_mean * bn_gamma / jnp.sqrt(bn_var + eps)).reshape(1, -1, 1, 1)
    return jnp.maximum(y * scale + bias, 0.0)


if __name__ == "__main__":
    key = jax.random.PRNGKey(0)
    k_x, k_w, k_g, k_b, k_m, k_v = jax.random.split(key, 6)

    N, dw_channels, H, W = 2, 4, 16, 16
    out_channels = 8                  # channel multiplier = 2 (groups=dw_channels)

    x = jax.random.normal(k_x, (N, dw_channels, H, W), jnp.float32)
    # Conv2d(dw, out, 3, 1, 1, groups=dw, bias=False) weight: (out, 1, 3, 3)
    weight = jax.random.normal(k_w, (out_channels, 1, 3, 3), jnp.float32) * 0.1
    # BatchNorm2d(out_channels) parameters / running stats (eval mode)
    gamma = 1.0 + 0.1 * jax.random.normal(k_g, (out_channels,), jnp.float32)
    beta = 0.1 * jax.random.normal(k_b, (out_channels,), jnp.float32)
    running_mean = 0.1 * jax.random.normal(k_m, (out_channels,), jnp.float32)
    running_var = jnp.abs(1.0 + 0.1 * jax.random.normal(k_v, (out_channels,),
                                                        jnp.float32))

    out = dwconv_bn_relu(x, weight, gamma, beta, running_mean, running_var)
    out = jax.block_until_ready(out)

    ref = _reference(x, weight, gamma, beta, running_mean, running_var)
    np.testing.assert_allclose(np.asarray(out), np.asarray(ref),
                               rtol=1e-4, atol=1e-4)

    print("KERNEL_OK")
</pallas_src>

<mosaic_0001>
module attributes {stable_mosaic.version = 11 : i64} {
  func.func @_roll_sign_probe_kernel(%arg0: memref<16x256xf32, #tpu.memory_space<vmem>>, %arg1: memref<16x256xf32, #tpu.memory_space<vmem>>, %arg2: memref<16x256xf32, #tpu.memory_space<vmem>>) attributes {dimension_semantics = [], scalar_prefetch = 0 : i64, scratch_operands = 0 : i64, tpu.core_type = #tpu.core_type<tc>} {
    %c0 = arith.constant 0 : index
    %c0_0 = arith.constant 0 : index
    %0 = vector.load %arg0[%c0, %c0_0] : memref<16x256xf32, #tpu.memory_space<vmem>>, vector<16x256xf32>
    %c1_i32 = arith.constant 1 : i32
    %1 = tpu.dynamic_rotate %0 by %c1_i32 dim 0 : vector<16x256xf32>, i32 -> vector<16x256xf32>
    %c0_1 = arith.constant 0 : index
    %c0_2 = arith.constant 0 : index
    %2 = vector.load %arg1[%c0_1, %c0_2] : memref<16x256xf32, #tpu.memory_space<vmem>>, vector<16x256xf32>
    tpu.vector_store %arg1[%c0_1, %c0_2], %1 {strides = array<i32>} : memref<16x256xf32, #tpu.memory_space<vmem>>, vector<16x256xf32>,
    %c0_3 = arith.constant 0 : index
    %c0_4 = arith.constant 0 : index
    %3 = vector.load %arg0[%c0_3, %c0_4] : memref<16x256xf32, #tpu.memory_space<vmem>>, vector<16x256xf32>
    %c1_i32_5 = arith.constant 1 : i32
    %4 = tpu.dynamic_rotate %3 by %c1_i32_5 dim 1 : vector<16x256xf32>, i32 -> vector<16x256xf32>
    %c0_6 = arith.constant 0 : index
    %c0_7 = arith.constant 0 : index
    %5 = vector.load %arg2[%c0_6, %c0_7] : memref<16x256xf32, #tpu.memory_space<vmem>>, vector<16x256xf32>
    tpu.vector_store %arg2[%c0_6, %c0_7], %4 {strides = array<i32>} : memref<16x256xf32, #tpu.memory_space<vmem>>, vector<16x256xf32>,
    return
  }
}

</mosaic_0001>

<llo_original>
// kernel: tpu_custom_call.1
$region0: #{tpu_custom_call.1}
  #allocation0 [shape = 'u32[]', space=smem, size = 0x4, offset = 0x4, fixed_abs, tag = 'smem constant byte address 0x4 - core index']
  #allocation1 [shape = 'u32[144,128]{1,0:T(1,128)}', space=vmem, size = 0x12000, scoped, tag = 'internal scratch']
  %s0 = inlined_call_operand.hbm [shape: f32[16,256], index: 0, kind: input, shape index: {}]
  %s1 = inlined_call_operand.hbm [shape: f32[16,256], index: 1, kind: output, shape index: {0}]
  %s2 = inlined_call_operand.hbm [shape: f32[16,256], index: 2, kind: output, shape index: {1}]
  %3 = xla_tuple %s1, %s2
  %s4 = sld [smem:[#allocation0]]
  $region26: #{tpu_custom_call.1} parent=0
    _
  %s6 = ssub.s32 1, %s4
  %s7 = scalar_select 0, %s6, %s4
  $region1: #{tpu_custom_call.1} parent=0
    #allocation2 [shape = 'u8[16384]{0}', space=vmem, size = 0x4000, scoped, tag = 'input window, operand 0, single buffered']
    #allocation3 [shape = 's32[1]{0}', space=sflag, size = 0x4, scoped, tag = 'scoped memory for tpu_custom_call.1']
    #allocation4 [shape = 's32[1]{0}', space=sflag, size = 0x4, scoped, tag = 'scoped memory for tpu_custom_call.1']
    #allocation5 [shape = 'u8[16384]{0}', space=vmem, size = 0x4000, scoped, tag = 'output window, operand 0, single buffered']
    #allocation6 [shape = 'u8[16384]{0}', space=vmem, size = 0x4000, scoped, tag = 'output window, operand 1, single buffered']
    #allocation7 [shape = 's32[1]{0}', space=sflag, size = 0x4, scoped, tag = 'scoped memory for tpu_custom_call.1']
    %8 = vsyncpa [#allocation3], 0
    %9 = vsyncpa [#allocation4], 0
    %10 = vsyncpa [#allocation7], 0
    // Predicated region
    $region2: #{tpu_custom_call.1} parent=1 // pred_check
      _
    $region3: #{tpu_custom_call.1} parent=1 // pred_check_branch
      %12 = sbr.rel (0) target = $region5
    $region4: #{tpu_custom_call.1} parent=1 // pred_region
      %s14 = ssub.s32 512, 512
      %15 = vsyncadd [#allocation3], %s14
      %s16 = sshll.u32 [#allocation2], 4
      %s17 = int_to_ptr.vmem [resolvable:$true] %s16
      %22 = dma.hbm_to_vmem [thread:$0]  %s0, 512, %s17, [#allocation3], 256, 256, 16
    $region5: #{tpu_custom_call.1} parent=1 // pred_fallthru
      _
    // Predicated region
    $region6: #{tpu_custom_call.1} parent=1 // pred_check
      _
    $region7: #{tpu_custom_call.1} parent=1 // pred_check_branch
      %24 = sbr.rel (0) target = $region9
    $region8: #{tpu_custom_call.1} parent=1 // pred_region
      %25 = dma.done [#allocation3], 512
    $region9: #{tpu_custom_call.1} parent=1 // pred_fallthru
      _
    %v26 = vld [vmem:[#allocation2] sm:$0xff]
    %v27 = vld [vmem:[#allocation2 + $0x8] sm:$0xff]
    %v28 = vld [vmem:[#allocation2 + $0x10] sm:$0xff]
    %v29 = vld [vmem:[#allocation2 + $0x18] sm:$0xff]
    %v30 = vrot.slane %v26, 7
    %v31 = vrot.slane %v27, 7
    %v32 = vrot.slane %v28, 7
    %v33 = vrot.slane %v29, 7
    %v34 = vlaneseq
    %v35 = vshrl.u32 %v34, 7
    %vm36 = vcmp.lt.s32.totalorder %v35, 1
    %v37 = vsel %vm36, %v30, %v32
    %v38 = vsel %vm36, %v31, %v33
    %v39 = vsel %vm36, %v32, %v30
    %v40 = vsel %vm36, %v33, %v31
    %41 = vst [vmem:[#allocation5] sm:$0xff] %v39
    %42 = vst [vmem:[#allocation5 + $0x8] sm:$0xff] %v40
    %43 = vst [vmem:[#allocation5 + $0x10] sm:$0xff] %v37
    %44 = vst [vmem:[#allocation5 + $0x18] sm:$0xff] %v38
    %v45 = vld [vmem:[#allocation2] sm:$0xff]
    %v46 = vld [vmem:[#allocation2 + $0x8] sm:$0xff]
    %v47 = vld [vmem:[#allocation2 + $0x10] sm:$0xff]
    %v48 = vld [vmem:[#allocation2 + $0x18] sm:$0xff]
    %49 = vrot.lane.b32.xlu0 %v45, 1
    %v50 = vpop.permute.xlu0 %49
    %51 = vrot.lane.b32.xlu0 %v47, 1
    %v52 = vpop.permute.xlu0 %51
    %53 = vrot.lane.b32.xlu0 %v46, 1
    %v54 = vpop.permute.xlu0 %53
    %55 = vrot.lane.b32.xlu0 %v48, 1
    %v56 = vpop.permute.xlu0 %55
    %v57 = vlaneseq
    %v58 = vand.u32 %v57, 127
    %vm59 = vcmp.lt.s32.totalorder %v58, 1
    %v60 = vsel %vm59, %v50, %v54
    %v61 = vsel %vm59, %v52, %v56
    %v62 = vsel %vm59, %v54, %v50
    %v63 = vsel %vm59, %v56, %v52
    %64 = vst [vmem:[#allocation6] sm:$0xff] %v62
    %65 = vst [vmem:[#allocation6 + $0x8] sm:$0xff] %v60
    %66 = vst [vmem:[#allocation6 + $0x10] sm:$0xff] %v63
    %67 = vst [vmem:[#allocation6 + $0x18] sm:$0xff] %v61
    // Predicated region
    $region10: #{tpu_custom_call.1} parent=1 // pred_check
      _
    $region11: #{tpu_custom_call.1} parent=1 // pred_check_branch
      %69 = sbr.rel (0) target = $region13
    $region12: #{tpu_custom_call.1} parent=1 // pred_region
      %s71 = ssub.s32 512, 512
      %72 = vsyncadd [#allocation4], %s71
      %s73 = sshll.u32 [#allocation5], 4
      %s74 = int_to_ptr.vmem [resolvable:$true] %s73
      %79 = dma.vmem_to_hbm [thread:$0]  %s74, 512, %s1, [#allocation4], 256, 256, 16
    $region13: #{tpu_custom_call.1} parent=1 // pred_fallthru
      _
    // Predicated region
    $region14: #{tpu_custom_call.1} parent=1 // pred_check
      _
    $region15: #{tpu_custom_call.1} parent=1 // pred_check_branch
      %81 = sbr.rel (0) target = $region17
    $region16: #{tpu_custom_call.1} parent=1 // pred_region
      %s83 = ssub.s32 512, 512
      %84 = vsyncadd [#allocation7], %s83
      %s85 = sshll.u32 [#allocation6], 4
      %s86 = int_to_ptr.vmem [resolvable:$true] %s85
      %91 = dma.vmem_to_hbm [thread:$0]  %s86, 512, %s2, [#allocation7], 256, 256, 16
    $region17: #{tpu_custom_call.1} parent=1 // pred_fallthru
      _
    // Predicated region
    $region18: #{tpu_custom_call.1} parent=1 // pred_check
      _
    $region19: #{tpu_custom_call.1} parent=1 // pred_check_branch
      %93 = sbr.rel (0) target = $region21
    $region20: #{tpu_custom_call.1} parent=1 // pred_region
      %94 = dma.done [#allocation4], 512
    $region21: #{tpu_custom_call.1} parent=1 // pred_fallthru
      _
    // Predicated region
    $region22: #{tpu_custom_call.1} parent=1 // pred_check
      _
    $region23: #{tpu_custom_call.1} parent=1 // pred_check_branch
      %96 = sbr.rel (0) target = $region25
    $region24: #{tpu_custom_call.1} parent=1 // pred_region
      %97 = dma.done [#allocation7], 512
    $region25: #{tpu_custom_call.1} parent=1 // pred_fallthru
      _
    %98 = vsyncpa [#allocation3], 1
    %99 = vsyncpa [#allocation4], 1
    %100 = vsyncpa [#allocation7], 1

</llo_original>
